<compile_context>
chip_gen: v5e
topology: v5e:2x2
jax: 0.10.0
libtpu: 0.0.40
codegen_flags: <defaults>
</compile_context>

<pallas_src>
import jax
import jax.numpy as jnp
from jax import lax
from jax.experimental import pallas as pl
from jax.experimental.pallas import tpu as pltpu


def _round_up(x, m):
    return (x + m - 1) // m * m


# ----------------------------------------------------------------------------
# Pallas kernel: fused linear acoustic model + log_softmax(dim=-1)
# ----------------------------------------------------------------------------
def _am_logsoftmax_kernel(x_ref, w_ref, b_ref, out_ref):
    # x_ref:   (tm, F_pad)     bf16 tile of frames
    # w_ref:   (F_pad, V_pad)  bf16 projection weight (constant across grid)
    # b_ref:   (1, V_pad)      f32 bias (padded classes = -1e30)
    # out_ref: (tm, V_pad)     f32 log-probabilities
    y = jnp.dot(x_ref[...], w_ref[...], preferred_element_type=jnp.float32)
    y = y + b_ref[...]                                   # broadcast bias over rows
    m = jnp.max(y, axis=-1, keepdims=True)               # row max (stability), f32
    e = jnp.exp(y - m)
    lse = jnp.log(jnp.sum(e, axis=-1, keepdims=True)) + m
    out_ref[...] = (y - lse).astype(out_ref.dtype)


def am_log_softmax(x_btf, w_fv, b_v, *, tm=256):
    """x_btf: [B, T, F] float32 -> log-probs [B, T, V_pad] float32.

    Padded vocab columns hold ~-1e30 log-probs; real columns are exactly
    log_softmax over the true vocab (padded classes contribute ~0 mass).
    """
    B, T, F = x_btf.shape
    V = w_fv.shape[1]
    M = B * T

    F_pad = _round_up(F, 128)
    V_pad = _round_up(V, 128)
    # bf16 operand tiles want sublane counts that are multiples of 16.
    tm = min(tm, _round_up(M, 16))
    M_pad = _round_up(M, tm)

    # Pad + cast inputs (zeros in padded K rows/cols leave the matmul unchanged;
    # padded vocab gets bias -1e30 so it drops out of the log-softmax).
    x2d = jnp.pad(x_btf.reshape(M, F), ((0, M_pad - M), (0, F_pad - F)))
    x2d = x2d.astype(jnp.bfloat16)
    w = jnp.pad(w_fv, ((0, F_pad - F), (0, V_pad - V))).astype(jnp.bfloat16)
    b = jnp.pad(b_v.astype(jnp.float32), (0, V_pad - V),
                constant_values=-1e30).reshape(1, V_pad)

    # VMEM budget: double-buffered x/out tiles + weight/bias buffers + headroom.
    x_bytes = tm * F_pad * 2
    o_bytes = tm * V_pad * 4
    w_bytes = F_pad * V_pad * 2
    b_bytes = V_pad * 4
    needed = 2 * (x_bytes + o_bytes) + 2 * (w_bytes + b_bytes)
    vmem_limit = int(min(64 << 20, max(needed + (4 << 20), 16 << 20)))

    out = pl.pallas_call(
        _am_logsoftmax_kernel,
        out_shape=jax.ShapeDtypeStruct((M_pad, V_pad), jnp.float32),
        grid_spec=pltpu.PrefetchScalarGridSpec(
            num_scalar_prefetch=0,
            grid=(M_pad // tm,),
            in_specs=[
                pl.BlockSpec((tm, F_pad), lambda i: (i, 0)),
                # Constant index_map: weight/bias are DMA'd once, not per step.
                pl.BlockSpec((F_pad, V_pad), lambda i: (0, 0)),
                pl.BlockSpec((1, V_pad), lambda i: (0, 0)),
            ],
            out_specs=pl.BlockSpec((tm, V_pad), lambda i: (i, 0)),
        ),
        compiler_params=pltpu.CompilerParams(
            dimension_semantics=("parallel",),
            vmem_limit_bytes=vmem_limit),
    )(x2d, w, b)

    # Drop padded frame rows; keep padded vocab columns (harmless for CTC:
    # its gathers only touch indices < V and padded columns carry ~0 mass).
    return out[:M].reshape(B, T, V_pad)


# ----------------------------------------------------------------------------
# Criterion: CTC negative log-likelihood (forward algorithm, log domain).
# TODO(synk): sequential label-dependent DP recursion kept in plain JAX
#             (lax.scan) — no clean Pallas equivalent for this control flow.
# ----------------------------------------------------------------------------
NEG = jnp.float32(-1e30)


def ctc_loss(log_probs, labels, input_lengths, label_lengths, blank=0):
    # log_probs: [B, T, V*], labels: [B, L] (int32), lengths: [B] (int32)
    lp = log_probs.astype(jnp.float32)
    B, T, _ = lp.shape
    L = labels.shape[1]
    S = 2 * L + 1

    # Extended label sequence: blank, l1, blank, l2, ..., blank
    ext = jnp.full((B, S), blank, dtype=jnp.int32)
    ext = ext.at[:, 1::2].set(labels)

    # Positions where ext[s] == ext[s-2] (cannot take the skip transition).
    same2 = jnp.concatenate(
        [jnp.ones((B, 2), dtype=bool), ext[:, 2:] == ext[:, :-2]], axis=1)

    # Hoist the vocab gather out of the scan: one vectorized pass over all T.
    ext_bts = jnp.broadcast_to(ext[:, None, :], (B, T, S))
    emit_all = jnp.take_along_axis(lp, ext_bts, axis=2)          # [B, T, S]

    # t = 0 initialization.
    emit0 = emit_all[:, 0, :]                                    # [B, S]
    alpha0 = jnp.full((B, S), NEG)
    alpha0 = alpha0.at[:, 0].set(emit0[:, 0])
    alpha0 = alpha0.at[:, 1].set(jnp.where(label_lengths > 0, emit0[:, 1], NEG))

    def step(alpha, xs):
        t, emit = xs                                             # emit: [B, S]
        a0 = alpha
        a1 = jnp.concatenate([jnp.full((B, 1), NEG), alpha[:, :-1]], axis=1)
        a2 = jnp.concatenate([jnp.full((B, 2), NEG), alpha[:, :-2]], axis=1)
        a2 = jnp.where(same2, NEG, a2)
        stacked = jnp.stack([a0, a1, a2], axis=0)                # [3, B, S]
        m = jnp.max(stacked, axis=0)
        comb = m + jnp.log(jnp.sum(jnp.exp(stacked - m[None]), axis=0))
        new = comb + emit
        # Freeze alpha once past this utterance's input length.
        new = jnp.where((t < input_lengths)[:, None], new, alpha)
        return new, None

    ts = jnp.arange(1, T)
    emits = jnp.swapaxes(emit_all[:, 1:, :], 0, 1)               # [T-1, B, S]
    alpha, _ = lax.scan(step, alpha0, (ts, emits))

    # Final states: indices 2*label_len and 2*label_len - 1.
    idx_last = 2 * label_lengths
    idx_prev = jnp.maximum(idx_last - 1, 0)
    a_last = jnp.take_along_axis(alpha, idx_last[:, None], axis=1)[:, 0]
    a_prev = jnp.take_along_axis(alpha, idx_prev[:, None], axis=1)[:, 0]
    m = jnp.maximum(a_last, a_prev)
    ll = m + jnp.log(jnp.exp(a_last - m) + jnp.exp(a_prev - m))
    # Empty-label edge case: both indices point at state 0 -> don't double count.
    ll = jnp.where(label_lengths > 0, ll, a_last)
    return jnp.mean(-ll)


# ----------------------------------------------------------------------------
# CatexModel.forward
# ----------------------------------------------------------------------------
def catex_forward(params, logits, labels, input_lengths, label_lengths):
    # specaug: training-time only augmentation — skipped (eval semantics).
    # self.infer(...) + torch.log_softmax(..., dim=-1), fused in the Pallas kernel:
    netout = am_log_softmax(logits, params["w"], params["b"])
    lens_o = input_lengths.astype(jnp.int32)   # synthetic AM: no subsampling
    loss = ctc_loss(netout, labels, lens_o, label_lengths.astype(jnp.int32))
    return loss


if __name__ == "__main__":
    B, T, F, V, L = 2, 8, 32, 16, 4

    key = jax.random.PRNGKey(0)
    k_x, k_w, k_b, k_lab = jax.random.split(key, 4)

    # Deterministic synthetic parameters for the acoustic model (Linear F->V).
    params = {
        "w": (jax.random.normal(k_w, (F, V), jnp.float32) / jnp.sqrt(F)),
        "b": jax.random.normal(k_b, (V,), jnp.float32) * 0.01,
    }

    logits = jax.random.normal(k_x, (B, T, F), jnp.float32)          # acoustic features
    labels = jax.random.randint(k_lab, (B, L), 1, V, jnp.int32)      # non-blank labels
    input_lengths = jnp.array([8, 6], dtype=jnp.int32)
    label_lengths = jnp.array([4, 3], dtype=jnp.int32)

    loss = jax.jit(catex_forward)(params, logits, labels, input_lengths, label_lengths)
    jax.block_until_ready(loss)

    # Sanity: finite scalar loss.
    assert loss.shape == () and bool(jnp.isfinite(loss))
    print("KERNEL_OK")
</pallas_src>

<mosaic_0001>
module attributes {stable_mosaic.version = 11 : i64} {
  func.func @_am_logsoftmax_kernel(%arg0: i32, %arg1: memref<16x128xbf16, #tpu.memory_space<vmem>>, %arg2: memref<128x128xbf16, #tpu.memory_space<vmem>>, %arg3: memref<1x128xf32, #tpu.memory_space<vmem>>, %arg4: memref<16x128xf32, #tpu.memory_space<vmem>>) attributes {dimension_semantics = [#tpu.dimension_semantics<parallel>], iteration_bounds = array<i64: 1>, scalar_prefetch = 0 : i64, scratch_operands = 0 : i64, tpu.core_type = #tpu.core_type<tc>, window_params = [{transform_indices = @transform_0, window_bounds = array<i64: 16, 128>}, {pipeline_mode = #tpu.pipeline_mode<synchronous>, transform_indices = @transform_1, window_bounds = array<i64: 128, 128>}, {pipeline_mode = #tpu.pipeline_mode<synchronous>, transform_indices = @transform_2, window_bounds = array<i64: 1, 128>}, {transform_indices = @transform_3, window_bounds = array<i64: 16, 128>}]} {
    %c0 = arith.constant 0 : index
    %c0_0 = arith.constant 0 : index
    %0 = vector.load %arg1[%c0, %c0_0] : memref<16x128xbf16, #tpu.memory_space<vmem>>, vector<16x128xbf16>
    %c0_1 = arith.constant 0 : index
    %c0_2 = arith.constant 0 : index
    %1 = vector.load %arg2[%c0_1, %c0_2] : memref<128x128xbf16, #tpu.memory_space<vmem>>, vector<128x128xbf16>
    %cst = arith.constant dense<0.000000e+00> : vector<16x128xf32>
    %2 = tpu.matmul %0, %1, %cst {dimension_numbers = #tpu.dot_dimension_numbers<[1], [0], [0], [1], [0, 0, 1, 1], [], []>} : vector<16x128xbf16>, vector<128x128xbf16>, vector<16x128xf32> -> vector<16x128xf32>
    %c0_3 = arith.constant 0 : index
    %c0_4 = arith.constant 0 : index
    %3 = vector.load %arg3[%c0_3, %c0_4] : memref<1x128xf32, #tpu.memory_space<vmem>>, vector<1x128xf32>
    %4 = vector.broadcast %3 : vector<1x128xf32> to vector<16x128xf32>
    %5 = arith.addf %2, %4 : vector<16x128xf32>
    %cst_5 = arith.constant dense<0xFF800000> : vector<16xf32>
    %6 = vector.multi_reduction <maximumf>, %5, %cst_5 [1] : vector<16x128xf32> to vector<16xf32>
    %7 = vector.shape_cast %6 : vector<16xf32> to vector<16x1xf32>
    %8 = vector.broadcast %7 : vector<16x1xf32> to vector<16x128xf32>
    %9 = arith.subf %5, %8 : vector<16x128xf32>
    %10 = math.exp %9 : vector<16x128xf32>
    %cst_6 = arith.constant dense<0.000000e+00> : vector<16xf32>
    %11 = vector.multi_reduction <add>, %10, %cst_6 [1] : vector<16x128xf32> to vector<16xf32>
    %12 = vector.shape_cast %11 : vector<16xf32> to vector<16x1xf32>
    %13 = math.log %12 : vector<16x1xf32>
    %14 = arith.addf %13, %7 : vector<16x1xf32>
    %15 = vector.broadcast %14 : vector<16x1xf32> to vector<16x128xf32>
    %16 = arith.subf %5, %15 : vector<16x128xf32>
    %c0_7 = arith.constant 0 : index
    %c0_8 = arith.constant 0 : index
    %17 = vector.load %arg4[%c0_7, %c0_8] : memref<16x128xf32, #tpu.memory_space<vmem>>, vector<16x128xf32>
    tpu.vector_store %arg4[%c0_7, %c0_8], %16 {strides = array<i32>} : memref<16x128xf32, #tpu.memory_space<vmem>>, vector<16x128xf32>,
    return
  }
  func.func @transform_0(%arg0: i32) -> (i32, i32) {
    %c0_i32 = arith.constant 0 : i32
    %c0_i32_0 = arith.constant 0 : i32
    return %arg0, %c0_i32 : i32, i32
  }
  func.func @transform_1(%arg0: i32) -> (i32, i32) {
    %c0_i32 = arith.constant 0 : i32
    %c0_i32_0 = arith.constant 0 : i32
    %c0_i32_1 = arith.constant 0 : i32
    return %c0_i32, %c0_i32_0 : i32, i32
  }
  func.func @transform_2(%arg0: i32) -> (i32, i32) {
    %c0_i32 = arith.constant 0 : i32
    %c0_i32_0 = arith.constant 0 : i32
    %c0_i32_1 = arith.constant 0 : i32
    return %c0_i32, %c0_i32_0 : i32, i32
  }
  func.func @transform_3(%arg0: i32) -> (i32, i32) {
    %c0_i32 = arith.constant 0 : i32
    %c0_i32_0 = arith.constant 0 : i32
    return %arg0, %c0_i32 : i32, i32
  }
}

</mosaic_0001>

<llo_original>
// kernel: catex_forward.1
$region0: #{catex_forward.1}
  #allocation0 [shape = 'u32[]', space=smem, size = 0x4, offset = 0x4, fixed_abs, tag = 'smem constant byte address 0x4 - core index']
  #allocation1 [shape = 'u32[72,128]{1,0:T(1,128)}', space=vmem, size = 0x9000, scoped, tag = 'internal scratch']
  %s0 = inlined_call_operand.vmem [shape: bf16[16,128], index: 0, kind: input, shape index: {}]
  %s1 = inlined_call_operand.vmem [shape: bf16[128,128], index: 1, kind: input, shape index: {}]
  %s2 = inlined_call_operand.vmem [shape: f32[1,128], index: 2, kind: input, shape index: {}]
  %s3 = inlined_call_operand.vmem [shape: f32[16,128], index: 3, kind: output, shape index: {}]
  %s4 = sld [smem:[#allocation0]]
  $region22: #{catex_forward.1} parent=0
    _
  %s6 = ssub.s32 1, %s4
  %s7 = scalar_select 0, %s6, %s4
  // Predicated region
  $region2: #{catex_forward.1} parent=0 // pred_check
    _
  $region3: #{catex_forward.1} parent=0 // pred_check_branch
    %9 = sbr.rel (0) target = $region5
  $region4: #{catex_forward.1} parent=0 // pred_region
    _
  $region5: #{catex_forward.1} parent=0 // pred_fallthru
    _
  // Predicated region
  $region6: #{catex_forward.1} parent=0 // pred_check
    _
  $region7: #{catex_forward.1} parent=0 // pred_check_branch
    %11 = sbr.rel (0) target = $region9
  $region8: #{catex_forward.1} parent=0 // pred_region
    _
  $region9: #{catex_forward.1} parent=0 // pred_fallthru
    _
  // Predicated region
  $region10: #{catex_forward.1} parent=0 // pred_check
    _
  $region11: #{catex_forward.1} parent=0 // pred_check_branch
    %13 = sbr.rel (0) target = $region13
  $region12: #{catex_forward.1} parent=0 // pred_region
    _
  $region13: #{catex_forward.1} parent=0 // pred_fallthru
    _
  %v14 = vld [vmem:[%s0] sm:$0xf]
  %v15 = vld [vmem:[%s0 + $0x4] sm:$0xf]
  %v16 = vld [vmem:[%s1] sm:$0xf]
  %v17 = vld [vmem:[%s1 + $0x4] sm:$0xf]
  %v18 = vld [vmem:[%s1 + $0x8] sm:$0xf]
  %v19 = vld [vmem:[%s1 + $0xc] sm:$0xf]
  %v20 = vld [vmem:[%s1 + $0x10] sm:$0xf]
  %v21 = vld [vmem:[%s1 + $0x14] sm:$0xf]
  %v22 = vld [vmem:[%s1 + $0x18] sm:$0xf]
  %v23 = vld [vmem:[%s1 + $0x1c] sm:$0xf]
  %v24 = vld [vmem:[%s1 + $0x20] sm:$0xf]
  %v25 = vld [vmem:[%s1 + $0x24] sm:$0xf]
  %v26 = vld [vmem:[%s1 + $0x28] sm:$0xf]
  %v27 = vld [vmem:[%s1 + $0x2c] sm:$0xf]
  %v28 = vld [vmem:[%s1 + $0x30] sm:$0xf]
  %v29 = vld [vmem:[%s1 + $0x34] sm:$0xf]
  %v30 = vld [vmem:[%s1 + $0x38] sm:$0xf]
  %v31 = vld [vmem:[%s1 + $0x3c] sm:$0xf]
  %v32 = vld [vmem:[%s2] sm:$0x1]
  %v34 = vperm.slane %v32, 0
  %v38 = vunpack.c.l.b16 %v14
  %v39 = vunpack.c.l.b16 %v15
  %v40 = vpack.c.b16 %v39, %v38
  %v58 = vunpack.c.l.b16 %v16
  %v59 = vunpack.c.l.b16 %v17
  %v60 = vunpack.c.l.b16 %v18
  %v61 = vunpack.c.l.b16 %v19
  %v62 = vunpack.c.l.b16 %v20
  %v63 = vunpack.c.l.b16 %v21
  %v64 = vunpack.c.l.b16 %v22
  %v65 = vunpack.c.l.b16 %v23
  %v66 = vunpack.c.l.b16 %v24
  %v67 = vunpack.c.l.b16 %v25
  %v68 = vunpack.c.l.b16 %v26
  %v69 = vunpack.c.l.b16 %v27
  %v70 = vunpack.c.l.b16 %v28
  %v71 = vunpack.c.l.b16 %v29
  %v72 = vunpack.c.l.b16 %v30
  %v73 = vunpack.c.l.b16 %v31
  %v74 = vpack.c.b16 %v59, %v58
  %v75 = vpack.c.b16 %v61, %v60
  %v76 = vpack.c.b16 %v63, %v62
  %v77 = vpack.c.b16 %v65, %v64
  %v78 = vpack.c.b16 %v67, %v66
  %v79 = vpack.c.b16 %v69, %v68
  %v80 = vpack.c.b16 %v71, %v70
  %v81 = vpack.c.b16 %v73, %v72
  %90 = vmatpush.bf16.msra.mxu0 %v81
  %91 = vmatpush.bf16.msra.mxu0 %v80
  %92 = vmatpush.bf16.msra.mxu0 %v79
  %93 = vmatpush.bf16.msra.mxu0 %v78
  %94 = vmatpush.bf16.msra.mxu0 %v77
  %95 = vmatpush.bf16.msra.mxu0 %v76
  %96 = vmatpush.bf16.msra.mxu0 %v75
  %97 = vmatpush.bf16.msra.mxu0 %v74
  %98 = vmatmul.bf16.gmra.mxu0 %v40
  %v99 = vpop.f32.mrf.mxu0
  %v100 = vadd.f32 %v34, %v99
  %v101 = vpop.f32.mrf.mxu0
  %v102 = vadd.f32 %v34, %v101
  %103 = vdwg.mxu0
  %104 = vmax.xlane.f32.xlu0 %v100
  %v105 = vpop.xlane.xlu0 %104
  %106 = vmax.xlane.f32.xlu0 %v102
  %v107 = vpop.xlane.xlu0 %106
  %v108 = vsub.f32 %v100, %v105
  %v109 = vsub.f32 %v102, %v107
  %v110 = vmul.f32 %v108, 1.442695
  %v111 = vpow.pop %v110
  %v112 = vmul.f32 %v109, 1.442695
  %v113 = vpow.pop %v112
  %114 = vadd.xlane.f32.xlu0 %v111
  %v115 = vpop.xlane.xlu0 %114
  %116 = vadd.xlane.f32.xlu0 %v113
  %v117 = vpop.xlane.xlu0 %116
  %v118 = vlog2.pop %v115
  %v119 = vmul.f32 %v118, 0.6931472
  %v120 = vlog2.pop %v117
  %v121 = vmul.f32 %v120, 0.6931472
  %v122 = vadd.f32 %v119, %v105
  %v123 = vadd.f32 %v121, %v107
  %v124 = vsub.f32 %v100, %v122
  %v125 = vsub.f32 %v102, %v123
  %126 = vst [vmem:[%s3] sm:$0xff] %v124
  %127 = vst [vmem:[%s3 + $0x8] sm:$0xff] %v125
  // Predicated region
  $region14: #{catex_forward.1} parent=0 // pred_check
    _
  $region15: #{catex_forward.1} parent=0 // pred_check_branch
    %129 = sbr.rel (0) target = $region17
  $region16: #{catex_forward.1} parent=0 // pred_region
    _
  $region17: #{catex_forward.1} parent=0 // pred_fallthru
    _
  // Predicated region
  $region18: #{catex_forward.1} parent=0 // pred_check
    _
  $region19: #{catex_forward.1} parent=0 // pred_check_branch
    %131 = sbr.rel (0) target = $region21
  $region20: #{catex_forward.1} parent=0 // pred_region
    _
  $region21: #{catex_forward.1} parent=0 // pred_fallthru
    _

</llo_original>
